<compile_context>
chip_gen: v7x
topology: tpu7x:2x2x1
jax: 0.10.0
libtpu: 0.0.40
codegen_flags: <defaults>
</compile_context>

<pallas_src>
import jax
import jax.numpy as jnp
from jax.experimental import pallas as pl
from jax.experimental.pallas import tpu as pltpu

# --- "config" (compile-time constants, mirroring the PyTorch config object) ---
HIDDEN_DIM = 16
IS_COVERAGE = True
N = 2 * HIDDEN_DIM  # hidden_dim * 2


def _round_up(x, m):
    return (x + m - 1) // m * m


def _pick_tiles(b, t_k):
    """Per-generation tile sizes + VMEM limit."""
    try:
        vmem_cap = int(pltpu.get_tpu_info().vmem_capacity_bytes)
    except Exception:  # no TPU info available -> conservative v7x-sized default
        vmem_cap = 64 * 1024 * 1024
    # v5e/v6e: 128 MiB VMEM -> larger t_k tiles; v7x: 64 MiB -> 512.
    max_tk = 1024 if vmem_cap >= (100 << 20) else 512
    block_tk = min(max_tk, _round_up(t_k, 128))
    # Large batch tiles amortize the ~0.35us per-grid-step overhead; keep >= 2
    # batch blocks when the batch allows so the "parallel" axis feeds both v7x TCs.
    block_b = min(32, _round_up(b, 8))
    if b > 8:
        block_b = min(block_b, _round_up((b + 1) // 2, 8))
    vmem_limit = int(vmem_cap * 0.75)
    return block_b, block_tk, vmem_limit


def _attention_kernel(s_t_ref, enc_out_ref, enc_feat_ref, mask_ref, cov_ref,
                      wdp_ref, bdp_ref, wc_ref, v_ref,
                      scores_ref, c_acc_ref, m_ref, d_ref,
                      dec_scr):
    j = pl.program_id(1)

    @pl.when(j == 0)
    def _init():
        # decode_proj(s_t_hat): tiny (block_b, n) @ (n, n) f32 matmul, hoisted to
        # the first t_k tile of each batch block.
        dec_scr[...] = (jnp.dot(s_t_ref[...], wdp_ref[...],
                                preferred_element_type=jnp.float32)
                        + bdp_ref[...])
        # Online-softmax state lives directly in the resident output blocks.
        m_ref[...] = jnp.full(m_ref.shape, -jnp.inf, jnp.float32)
        d_ref[...] = jnp.zeros(d_ref.shape, jnp.float32)
        c_acc_ref[...] = jnp.zeros(c_acc_ref.shape, jnp.float32)

    mask = mask_ref[...]                                     # (BB, BT) f32
    cov = cov_ref[...]                                       # (BB, BT) f32

    # ---- lane-dense score path: everything laid out (BB, n, BT), t_k on lanes ----
    att = enc_feat_ref[...].astype(jnp.float32) + dec_scr[...][:, :, None]
    if IS_COVERAGE:
        att = att + cov[:, None, :] * wc_ref[...][None, :, :]     # W_c(coverage)
    e = jnp.tanh(att)                                        # EUP, f32, full lanes
    scores = jnp.sum(e * v_ref[...][None, :, :], axis=1)     # v(e): (BB, BT)
    scores_ref[...] = scores                                 # raw scores, per-tile,
                                                             # lane-dense store

    # ---- online (flash-style) masked softmax + context accumulation ----
    m_prev = m_ref[...]                                      # (BB, 1)
    m_new = jnp.maximum(m_prev, jnp.max(scores, axis=-1, keepdims=True))
    alpha = jnp.exp(m_prev - m_new)
    # Fused normalization numerator: mask folded in (exact division in wrapper).
    p = jnp.exp(scores - m_new) * mask                       # (BB, BT) f32
    d_ref[...] = alpha * d_ref[...] + jnp.sum(p, axis=-1, keepdims=True)
    # Context partial sum: VPU multiply + lane reduction (q=1, n=32 is a poor MXU
    # shape).  p stays f32 for accuracy; enc_out streamed bf16, accumulated in f32.
    enc = enc_out_ref[...].astype(jnp.float32)               # (BB, n, BT)
    c_acc_ref[...] = alpha * c_acc_ref[...] + jnp.sum(p[:, None, :] * enc, axis=2)
    m_ref[...] = m_new


def attention_forward(params, s_t_hat, encoder_outputs, encoder_feature,
                      enc_padding_mask, coverage):
    b, t_k, n = encoder_outputs.shape
    f32 = jnp.float32
    enc_feat = encoder_feature.reshape(b, t_k, n)
    mask = enc_padding_mask.reshape(b, t_k).astype(f32)
    cov = coverage.reshape(b, t_k).astype(f32)
    s_t = s_t_hat.astype(f32)

    block_b, block_tk, vmem_limit = _pick_tiles(b, t_k)
    b_pad = _round_up(b, block_b)
    tk_pad = _round_up(t_k, block_tk)
    grid_b = b_pad // block_b
    grid_tk = tk_pad // block_tk

    # Big streams -> (b, n, t_k) bf16.  Cast fused with the transpose (and the pad
    # when one is needed); no f32 pad copies are materialized.
    enc_out_t = jnp.transpose(encoder_outputs.astype(jnp.bfloat16), (0, 2, 1))
    enc_feat_t = jnp.transpose(enc_feat.astype(jnp.bfloat16), (0, 2, 1))

    pad_b, pad_t = b_pad - b, tk_pad - t_k
    if pad_b or pad_t:
        enc_out_t = jnp.pad(enc_out_t, ((0, pad_b), (0, 0), (0, pad_t)))
        enc_feat_t = jnp.pad(enc_feat_t, ((0, pad_b), (0, 0), (0, pad_t)))
        # Padded t_k columns get mask = 0 so they never contribute to d or c_t;
        # padded batch rows are sliced off before any division, so no inf/NaN.
        mask_k = jnp.pad(mask, ((0, pad_b), (0, pad_t)))
        cov_k = jnp.pad(cov, ((0, pad_b), (0, pad_t)))
        s_t_k = jnp.pad(s_t, ((0, pad_b), (0, 0)))
    else:
        mask_k, cov_k, s_t_k = mask, cov, s_t

    in_specs = [
        pl.BlockSpec((block_b, n), lambda i, j: (i, 0)),                 # s_t_hat
        pl.BlockSpec((block_b, n, block_tk), lambda i, j: (i, 0, j)),    # enc_out^T
        pl.BlockSpec((block_b, n, block_tk), lambda i, j: (i, 0, j)),    # enc_feat^T
        pl.BlockSpec((block_b, block_tk), lambda i, j: (i, j)),          # mask
        pl.BlockSpec((block_b, block_tk), lambda i, j: (i, j)),          # coverage
        pl.BlockSpec((n, n), lambda i, j: (0, 0)),                       # wdp_t
        pl.BlockSpec((1, n), lambda i, j: (0, 0)),                       # bdp
        pl.BlockSpec((n, 1), lambda i, j: (0, 0)),                       # wc
        pl.BlockSpec((n, 1), lambda i, j: (0, 0)),                       # v
    ]
    out_specs = (
        pl.BlockSpec((block_b, block_tk), lambda i, j: (i, j)),          # raw scores
        pl.BlockSpec((block_b, n), lambda i, j: (i, 0)),                 # c_t acc
        pl.BlockSpec((block_b, 1), lambda i, j: (i, 0)),                 # running max
        pl.BlockSpec((block_b, 1), lambda i, j: (i, 0)),                 # masked denom
    )
    out_shapes = (
        jax.ShapeDtypeStruct((b_pad, tk_pad), f32),
        jax.ShapeDtypeStruct((b_pad, n), f32),
        jax.ShapeDtypeStruct((b_pad, 1), f32),
        jax.ShapeDtypeStruct((b_pad, 1), f32),
    )
    scratch_shapes = [pltpu.VMEM((block_b, n), f32)]    # dec_fea (hoisted proj)

    flops = int(2 * b_pad * n * n + 8 * b_pad * tk_pad * n)
    transcendentals = int(b_pad * tk_pad * (n + 2))
    bytes_accessed = int(2 * 2 * b_pad * tk_pad * n          # two bf16 streams
                         + 4 * 3 * b_pad * tk_pad            # mask, cov, scores
                         + 4 * 4 * b_pad * n)                # s_t, c_acc, weights

    scores, c_acc, m_run, d_run = pl.pallas_call(
        _attention_kernel,
        grid=(grid_b, grid_tk),
        in_specs=in_specs,
        out_specs=out_specs,
        out_shape=out_shapes,
        scratch_shapes=scratch_shapes,
        compiler_params=pltpu.CompilerParams(
            dimension_semantics=("parallel", "arbitrary"),
            vmem_limit_bytes=vmem_limit),
        cost_estimate=pl.CostEstimate(flops=flops,
                                      transcendentals=transcendentals,
                                      bytes_accessed=bytes_accessed),
    )(s_t_k, enc_out_t, enc_feat_t, mask_k, cov_k,
      params["wdp_t"], params["bdp"], params["wc"], params["v"])

    # Cheap fixup pass (fused by XLA) on the small (b, t_k)/(b, n) arrays: exact
    # normalization (no approx reciprocal) + coverage update.
    # Note: scores are bounded by ||v||_1 (e = tanh in [-1,1]), so exp(s - m) with
    # the running max m never over/underflows for realistic weight scales.
    scores = scores[:b, :t_k]
    m_run = m_run[:b]
    d_run = d_run[:b]
    attn = jnp.exp(scores - m_run) * mask / d_run
    c_t = c_acc[:b] / d_run
    cov_new = (cov + attn) if IS_COVERAGE else cov
    return c_t, attn, cov_new


def attention_reference(params, s_t_hat, encoder_outputs, encoder_feature,
                        enc_padding_mask, coverage):
    """Pure-JAX f32 mirror of the PyTorch forward, for correctness check."""
    b, t_k, n = encoder_outputs.shape
    dec_fea = s_t_hat @ params["wdp_t"] + params["bdp"][0]
    dec_exp = jnp.broadcast_to(dec_fea[:, None, :], (b, t_k, n)).reshape(-1, n)
    att = encoder_feature + dec_exp
    if IS_COVERAGE:
        att = att + coverage.reshape(-1, 1) @ params["wc"].T
    e = jnp.tanh(att)
    scores = (e @ params["v"]).reshape(b, t_k)
    attn_ = jax.nn.softmax(scores, axis=1) * enc_padding_mask
    attn = attn_ / jnp.sum(attn_, axis=1, keepdims=True)
    c_t = jnp.einsum("bt,btn->bn", attn, encoder_outputs)
    cov_new = coverage.reshape(b, t_k) + attn
    return c_t, attn, cov_new


if __name__ == "__main__":
    key = jax.random.PRNGKey(0)
    keys = jax.random.split(key, 8)

    b, t_k, n = 2, 8, N

    s_t_hat = jax.random.normal(keys[0], (b, n), jnp.float32)
    encoder_outputs = jax.random.normal(keys[1], (b, t_k, n), jnp.float32)
    encoder_feature = jax.random.normal(keys[2], (b * t_k, n), jnp.float32)
    enc_padding_mask = jnp.concatenate(
        [jnp.ones((b, t_k - 2), jnp.float32), jnp.zeros((b, 2), jnp.float32)],
        axis=1)
    coverage = jax.random.uniform(keys[3], (b, t_k), jnp.float32)

    # decode_proj: Linear(n, n)  -> wdp_t is weight.T (n_in, n_out), bdp is bias
    # W_c:         Linear(1, n, bias=False) -> wc is weight     (n, 1)
    # v:           Linear(n, 1, bias=False) -> v  is weight.T   (n, 1)
    params = {
        "wdp_t": 0.1 * jax.random.normal(keys[4], (n, n), jnp.float32),
        "bdp":   0.1 * jax.random.normal(keys[5], (1, n), jnp.float32),
        "wc":    0.1 * jax.random.normal(keys[6], (n, 1), jnp.float32),
        "v":     0.1 * jax.random.normal(keys[7], (n, 1), jnp.float32),
    }

    outs = attention_forward(params, s_t_hat, encoder_outputs,
                             encoder_feature, enc_padding_mask, coverage)
    jax.block_until_ready(outs)

    refs = attention_reference(params, s_t_hat, encoder_outputs,
                               encoder_feature, enc_padding_mask, coverage)
    # Normalization is exact now; remaining error is from the bf16 streaming of
    # encoder_outputs / encoder_feature (everything else is f32).
    for o, r in zip(outs, refs):
        assert o.shape == r.shape
        assert jnp.allclose(o, r, atol=2e-2, rtol=2e-2), (o, r)

    print("KERNEL_OK")
</pallas_src>

<mosaic_0001>
module attributes {stable_mosaic.version = 11 : i64} {
  func.func @_attention_kernel(%arg0: i32, %arg1: i32, %arg2: memref<8x32xf32, #tpu.memory_space<vmem>>, %arg3: memref<8x32x128xbf16, #tpu.memory_space<vmem>>, %arg4: memref<8x32x128xbf16, #tpu.memory_space<vmem>>, %arg5: memref<8x128xf32, #tpu.memory_space<vmem>>, %arg6: memref<8x128xf32, #tpu.memory_space<vmem>>, %arg7: memref<32x32xf32, #tpu.memory_space<vmem>>, %arg8: memref<1x32xf32, #tpu.memory_space<vmem>>, %arg9: memref<32x1xf32, #tpu.memory_space<vmem>>, %arg10: memref<32x1xf32, #tpu.memory_space<vmem>>, %arg11: memref<8x128xf32, #tpu.memory_space<vmem>>, %arg12: memref<8x32xf32, #tpu.memory_space<vmem>>, %arg13: memref<8x1xf32, #tpu.memory_space<vmem>>, %arg14: memref<8x1xf32, #tpu.memory_space<vmem>>, %arg15: memref<8x32xf32, #tpu.memory_space<vmem>>) attributes {dimension_semantics = [#tpu.dimension_semantics<parallel>, #tpu.dimension_semantics<arbitrary>], iteration_bounds = array<i64: 1, 1>, scalar_prefetch = 0 : i64, scratch_operands = 1 : i64, tpu.core_type = #tpu.core_type<tc>, window_params = [{transform_indices = @transform_0, window_bounds = array<i64: 8, 32>}, {transform_indices = @transform_1, window_bounds = array<i64: 8, 32, 128>}, {transform_indices = @transform_2, window_bounds = array<i64: 8, 32, 128>}, {transform_indices = @transform_3, window_bounds = array<i64: 8, 128>}, {transform_indices = @transform_4, window_bounds = array<i64: 8, 128>}, {pipeline_mode = #tpu.pipeline_mode<synchronous>, transform_indices = @transform_5, window_bounds = array<i64: 32, 32>}, {pipeline_mode = #tpu.pipeline_mode<synchronous>, transform_indices = @transform_6, window_bounds = array<i64: 1, 32>}, {pipeline_mode = #tpu.pipeline_mode<synchronous>, transform_indices = @transform_7, window_bounds = array<i64: 32, 1>}, {pipeline_mode = #tpu.pipeline_mode<synchronous>, transform_indices = @transform_8, window_bounds = array<i64: 32, 1>}, {transform_indices = @transform_9, window_bounds = array<i64: 8, 128>}, {transform_indices = @transform_10, window_bounds = array<i64: 8, 32>}, {transform_indices = @transform_11, window_bounds = array<i64: 8, 1>}, {transform_indices = @transform_12, window_bounds = array<i64: 8, 1>}]} {
    %c0_i32 = arith.constant 0 : i32
    %0 = arith.cmpi eq, %arg1, %c0_i32 : i32
    %1 = arith.extui %0 : i1 to i32
    %c0_i32_0 = arith.constant 0 : i32
    %2 = arith.cmpi ne, %1, %c0_i32_0 : i32
    scf.if %2 {
      %c0_33 = arith.constant 0 : index
      %c0_34 = arith.constant 0 : index
      %53 = vector.load %arg2[%c0_33, %c0_34] : memref<8x32xf32, #tpu.memory_space<vmem>>, vector<8x32xf32>
      %c0_35 = arith.constant 0 : index
      %c0_36 = arith.constant 0 : index
      %54 = vector.load %arg7[%c0_35, %c0_36] : memref<32x32xf32, #tpu.memory_space<vmem>>, vector<32x32xf32>
      %cst_37 = arith.constant dense<0.000000e+00> : vector<8x32xf32>
      %55 = tpu.matmul %53, %54, %cst_37 {dimension_numbers = #tpu.dot_dimension_numbers<[1], [0], [0], [1], [0, 0, 1, 1], [], []>} : vector<8x32xf32>, vector<32x32xf32>, vector<8x32xf32> -> vector<8x32xf32>
      %c0_38 = arith.constant 0 : index
      %c0_39 = arith.constant 0 : index
      %56 = vector.load %arg8[%c0_38, %c0_39] : memref<1x32xf32, #tpu.memory_space<vmem>>, vector<1x32xf32>
      %57 = vector.broadcast %56 : vector<1x32xf32> to vector<8x32xf32>
      %58 = arith.addf %55, %57 : vector<8x32xf32>
      %c0_40 = arith.constant 0 : index
      %c0_41 = arith.constant 0 : index
      %59 = vector.load %arg15[%c0_40, %c0_41] : memref<8x32xf32, #tpu.memory_space<vmem>>, vector<8x32xf32>
      tpu.vector_store %arg15[%c0_40, %c0_41], %58 {strides = array<i32>} : memref<8x32xf32, #tpu.memory_space<vmem>>, vector<8x32xf32>,
      %cst_42 = arith.constant 0xFF800000 : f32
      %60 = vector.broadcast %cst_42 : f32 to vector<8x1xf32>
      %c0_43 = arith.constant 0 : index
      %c0_44 = arith.constant 0 : index
      %61 = vector.load %arg13[%c0_43, %c0_44] : memref<8x1xf32, #tpu.memory_space<vmem>>, vector<8x1xf32>
      tpu.vector_store %arg13[%c0_43, %c0_44], %60 {strides = array<i32>} : memref<8x1xf32, #tpu.memory_space<vmem>>, vector<8x1xf32>,
      %cst_45 = arith.constant 0.000000e+00 : f32
      %62 = vector.broadcast %cst_45 : f32 to vector<8x1xf32>
      %c0_46 = arith.constant 0 : index
      %c0_47 = arith.constant 0 : index
      %63 = vector.load %arg14[%c0_46, %c0_47] : memref<8x1xf32, #tpu.memory_space<vmem>>, vector<8x1xf32>
      tpu.vector_store %arg14[%c0_46, %c0_47], %62 {strides = array<i32>} : memref<8x1xf32, #tpu.memory_space<vmem>>, vector<8x1xf32>,
      %cst_48 = arith.constant 0.000000e+00 : f32
      %64 = vector.broadcast %cst_48 : f32 to vector<8x32xf32>
      %c0_49 = arith.constant 0 : index
      %c0_50 = arith.constant 0 : index
      %65 = vector.load %arg12[%c0_49, %c0_50] : memref<8x32xf32, #tpu.memory_space<vmem>>, vector<8x32xf32>
      tpu.vector_store %arg12[%c0_49, %c0_50], %64 {strides = array<i32>} : memref<8x32xf32, #tpu.memory_space<vmem>>, vector<8x32xf32>,
    } else {
    }
    %c0 = arith.constant 0 : index
    %c0_1 = arith.constant 0 : index
    %3 = vector.load %arg5[%c0, %c0_1] : memref<8x128xf32, #tpu.memory_space<vmem>>, vector<8x128xf32>
    %c0_2 = arith.constant 0 : index
    %c0_3 = arith.constant 0 : index
    %4 = vector.load %arg6[%c0_2, %c0_3] : memref<8x128xf32, #tpu.memory_space<vmem>>, vector<8x128xf32>
    %c0_4 = arith.constant 0 : index
    %c0_5 = arith.constant 0 : index
    %c0_6 = arith.constant 0 : index
    %5 = vector.load %arg4[%c0_4, %c0_5, %c0_6] : memref<8x32x128xbf16, #tpu.memory_space<vmem>>, vector<8x32x128xbf16>
    %6 = arith.extf %5 : vector<8x32x128xbf16> to vector<8x32x128xf32>
    %c0_7 = arith.constant 0 : index
    %c0_8 = arith.constant 0 : index
    %7 = vector.load %arg15[%c0_7, %c0_8] : memref<8x32xf32, #tpu.memory_space<vmem>>, vector<8x32xf32>
    %8 = vector.shape_cast %7 : vector<8x32xf32> to vector<8x32x1xf32>
    %9 = vector.broadcast %8 : vector<8x32x1xf32> to vector<8x32x128xf32>
    %10 = arith.addf %6, %9 : vector<8x32x128xf32>
    %11 = vector.shape_cast %4 : vector<8x128xf32> to vector<8x1x128xf32>
    %c0_9 = arith.constant 0 : index
    %c0_10 = arith.constant 0 : index
    %12 = vector.load %arg9[%c0_9, %c0_10] : memref<32x1xf32, #tpu.memory_space<vmem>>, vector<32x1xf32>
    %13 = vector.shape_cast %12 : vector<32x1xf32> to vector<1x32x1xf32>
    %14 = vector.broadcast %11 : vector<8x1x128xf32> to vector<8x32x128xf32>
    %15 = vector.broadcast %13 : vector<1x32x1xf32> to vector<8x32x128xf32>
    %16 = arith.mulf %14, %15 : vector<8x32x128xf32>
    %17 = arith.addf %10, %16 : vector<8x32x128xf32>
    %18 = math.tanh %17 : vector<8x32x128xf32>
    %c0_11 = arith.constant 0 : index
    %c0_12 = arith.constant 0 : index
    %19 = vector.load %arg10[%c0_11, %c0_12] : memref<32x1xf32, #tpu.memory_space<vmem>>, vector<32x1xf32>
    %20 = vector.shape_cast %19 : vector<32x1xf32> to vector<1x32x1xf32>
    %21 = vector.broadcast %20 : vector<1x32x1xf32> to vector<8x32x128xf32>
    %22 = arith.mulf %18, %21 : vector<8x32x128xf32>
    %cst = arith.constant dense<0.000000e+00> : vector<8x128xf32>
    %23 = vector.multi_reduction <add>, %22, %cst [1] : vector<8x32x128xf32> to vector<8x128xf32>
    %c0_13 = arith.constant 0 : index
    %c0_14 = arith.constant 0 : index
    %24 = vector.load %arg11[%c0_13, %c0_14] : memref<8x128xf32, #tpu.memory_space<vmem>>, vector<8x128xf32>
    tpu.vector_store %arg11[%c0_13, %c0_14], %23 {strides = array<i32>} : memref<8x128xf32, #tpu.memory_space<vmem>>, vector<8x128xf32>,
    %c0_15 = arith.constant 0 : index
    %c0_16 = arith.constant 0 : index
    %25 = vector.load %arg13[%c0_15, %c0_16] : memref<8x1xf32, #tpu.memory_space<vmem>>, vector<8x1xf32>
    %cst_17 = arith.constant dense<0xFF800000> : vector<8xf32>
    %26 = vector.multi_reduction <maximumf>, %23, %cst_17 [1] : vector<8x128xf32> to vector<8xf32>
    %27 = vector.shape_cast %26 : vector<8xf32> to vector<8x1xf32>
    %28 = arith.maximumf %25, %27 : vector<8x1xf32>
    %29 = arith.subf %25, %28 : vector<8x1xf32>
    %30 = math.exp %29 : vector<8x1xf32>
    %31 = vector.broadcast %28 : vector<8x1xf32> to vector<8x128xf32>
    %32 = arith.subf %23, %31 : vector<8x128xf32>
    %33 = math.exp %32 : vector<8x128xf32>
    %34 = arith.mulf %33, %3 : vector<8x128xf32>
    %c0_18 = arith.constant 0 : index
    %c0_19 = arith.constant 0 : index
    %35 = vector.load %arg14[%c0_18, %c0_19] : memref<8x1xf32, #tpu.memory_space<vmem>>, vector<8x1xf32>
    %36 = arith.mulf %30, %35 : vector<8x1xf32>
    %cst_20 = arith.constant dense<0.000000e+00> : vector<8xf32>
    %37 = vector.multi_reduction <add>, %34, %cst_20 [1] : vector<8x128xf32> to vector<8xf32>
    %38 = vector.shape_cast %37 : vector<8xf32> to vector<8x1xf32>
    %39 = arith.addf %36, %38 : vector<8x1xf32>
    %c0_21 = arith.constant 0 : index
    %c0_22 = arith.constant 0 : index
    %40 = vector.load %arg14[%c0_21, %c0_22] : memref<8x1xf32, #tpu.memory_space<vmem>>, vector<8x1xf32>
    tpu.vector_store %arg14[%c0_21, %c0_22], %39 {strides = array<i32>} : memref<8x1xf32, #tpu.memory_space<vmem>>, vector<8x1xf32>,
    %c0_23 = arith.constant 0 : index
    %c0_24 = arith.constant 0 : index
    %c0_25 = arith.constant 0 : index
    %41 = vector.load %arg3[%c0_23, %c0_24, %c0_25] : memref<8x32x128xbf16, #tpu.memory_space<vmem>>, vector<8x32x128xbf16>
    %42 = arith.extf %41 : vector<8x32x128xbf16> to vector<8x32x128xf32>
    %c0_26 = arith.constant 0 : index
    %c0_27 = arith.constant 0 : index
    %43 = vector.load %arg12[%c0_26, %c0_27] : memref<8x32xf32, #tpu.memory_space<vmem>>, vector<8x32xf32>
    %44 = vector.broadcast %30 : vector<8x1xf32> to vector<8x32xf32>
    %45 = arith.mulf %44, %43 : vector<8x32xf32>
    %46 = vector.shape_cast %34 : vector<8x128xf32> to vector<8x1x128xf32>
    %47 = vector.broadcast %46 : vector<8x1x128xf32> to vector<8x32x128xf32>
    %48 = arith.mulf %47, %42 : vector<8x32x128xf32>
    %cst_28 = arith.constant dense<0.000000e+00> : vector<8x32xf32>
    %49 = vector.multi_reduction <add>, %48, %cst_28 [2] : vector<8x32x128xf32> to vector<8x32xf32>
    %50 = arith.addf %45, %49 : vector<8x32xf32>
    %c0_29 = arith.constant 0 : index
    %c0_30 = arith.constant 0 : index
    %51 = vector.load %arg12[%c0_29, %c0_30] : memref<8x32xf32, #tpu.memory_space<vmem>>, vector<8x32xf32>
    tpu.vector_store %arg12[%c0_29, %c0_30], %50 {strides = array<i32>} : memref<8x32xf32, #tpu.memory_space<vmem>>, vector<8x32xf32>,
    %c0_31 = arith.constant 0 : index
    %c0_32 = arith.constant 0 : index
    %52 = vector.load %arg13[%c0_31, %c0_32] : memref<8x1xf32, #tpu.memory_space<vmem>>, vector<8x1xf32>
    tpu.vector_store %arg13[%c0_31, %c0_32], %28 {strides = array<i32>} : memref<8x1xf32, #tpu.memory_space<vmem>>, vector<8x1xf32>,
    return
  }
  func.func @transform_0(%arg0: i32, %arg1: i32) -> (i32, i32) {
    %c0_i32 = arith.constant 0 : i32
    %c0_i32_0 = arith.constant 0 : i32
    return %arg0, %c0_i32 : i32, i32
  }
  func.func @transform_1(%arg0: i32, %arg1: i32) -> (i32, i32, i32) {
    %c0_i32 = arith.constant 0 : i32
    %c0_i32_0 = arith.constant 0 : i32
    return %arg0, %c0_i32, %arg1 : i32, i32, i32
  }
  func.func @transform_2(%arg0: i32, %arg1: i32) -> (i32, i32, i32) {
    %c0_i32 = arith.constant 0 : i32
    %c0_i32_0 = arith.constant 0 : i32
    return %arg0, %c0_i32, %arg1 : i32, i32, i32
  }
  func.func @transform_3(%arg0: i32, %arg1: i32) -> (i32, i32) {
    %c0_i32 = arith.constant 0 : i32
    return %arg0, %arg1 : i32, i32
  }
  func.func @transform_4(%arg0: i32, %arg1: i32) -> (i32, i32) {
    %c0_i32 = arith.constant 0 : i32
    return %arg0, %arg1 : i32, i32
  }
  func.func @transform_5(%arg0: i32, %arg1: i32) -> (i32, i32) {
    %c0_i32 = arith.constant 0 : i32
    %c0_i32_0 = arith.constant 0 : i32
    %c0_i32_1 = arith.constant 0 : i32
    return %c0_i32, %c0_i32_0 : i32, i32
  }
  func.func @transform_6(%arg0: i32, %arg1: i32) -> (i32, i32) {
    %c0_i32 = arith.constant 0 : i32
    %c0_i32_0 = arith.constant 0 : i32
    %c0_i32_1 = arith.constant 0 : i32
    return %c0_i32, %c0_i32_0 : i32, i32
  }
  func.func @transform_7(%arg0: i32, %arg1: i32) -> (i32, i32) {
    %c0_i32 = arith.constant 0 : i32
    %c0_i32_0 = arith.constant 0 : i32
    %c0_i32_1 = arith.constant 0 : i32
    return %c0_i32, %c0_i32_0 : i32, i32
  }
  func.func @transform_8(%arg0: i32, %arg1: i32) -> (i32, i32) {
    %c0_i32 = arith.constant 0 : i32
    %c0_i32_0 = arith.constant 0 : i32
    %c0_i32_1 = arith.constant 0 : i32
    return %c0_i32, %c0_i32_0 : i32, i32
  }
  func.func @transform_9(%arg0: i32, %arg1: i32) -> (i32, i32) {
    %c0_i32 = arith.constant 0 : i32
    return %arg0, %arg1 : i32, i32
  }
  func.func @transform_10(%arg0: i32, %arg1: i32) -> (i32, i32) {
    %c0_i32 = arith.constant 0 : i32
    %c0_i32_0 = arith.constant 0 : i32
    return %arg0, %c0_i32 : i32, i32
  }
  func.func @transform_11(%arg0: i32, %arg1: i32) -> (i32, i32) {
    %c0_i32 = arith.constant 0 : i32
    %c0_i32_0 = arith.constant 0 : i32
    return %arg0, %c0_i32 : i32, i32
  }
  func.func @transform_12(%arg0: i32, %arg1: i32) -> (i32, i32) {
    %c0_i32 = arith.constant 0 : i32
    %c0_i32_0 = arith.constant 0 : i32
    return %arg0, %c0_i32 : i32, i32
  }
}

</mosaic_0001>

<llo_original>
// kernel: tpu_custom_call.1
$region0: #{tpu_custom_call.1}
  #allocation0 [shape = 'u32[]', space=smem, size = 0x4, offset = 0x4, fixed_abs, tag = 'smem constant byte address 0x4 - core index']
  #allocation1 [shape = 'u32[144,128]{1,0:T(1,128)}', space=vmem, size = 0x12000, scoped, tag = 'internal scratch']
  #allocation2 [shape = 'f32[8,32]{1,0:T(8,128)}', space=vmem, size = 0x1000, scoped, tag = 'scratch operand']
  %s0 = inlined_call_operand.vmem [shape: f32[8,32], index: 0, kind: input, shape index: {}]
  %s1 = inlined_call_operand.hbm [shape: bf16[8,32,128], index: 1, kind: input, shape index: {}]
  %s2 = inlined_call_operand.hbm [shape: bf16[8,32,128], index: 2, kind: input, shape index: {}]
  %s3 = inlined_call_operand.vmem [shape: f32[8,128], index: 3, kind: input, shape index: {}]
  %s4 = inlined_call_operand.vmem [shape: f32[8,128], index: 4, kind: input, shape index: {}]
  %s5 = inlined_call_operand.vmem [shape: f32[32,32], index: 5, kind: input, shape index: {}]
  %s6 = inlined_call_operand.vmem [shape: f32[1,32], index: 6, kind: input, shape index: {}]
  %s7 = inlined_call_operand.vmem [shape: f32[32,1], index: 7, kind: input, shape index: {}]
  %s8 = inlined_call_operand.vmem [shape: f32[32,1], index: 8, kind: input, shape index: {}]
  %s9 = inlined_call_operand.hbm [shape: f32[8,128], index: 9, kind: output, shape index: {0}]
  %s10 = inlined_call_operand.hbm [shape: f32[8,32], index: 10, kind: output, shape index: {1}]
  %s11 = inlined_call_operand.vmem [shape: f32[8,1], index: 11, kind: output, shape index: {2}]
  %s12 = inlined_call_operand.vmem [shape: f32[8,1], index: 12, kind: output, shape index: {3}]
  %13 = xla_tuple %s9, %s10, %s11, %s12
  %s14 = sld [smem:[#allocation0]]
  $region82: #{tpu_custom_call.1} parent=0
    _
  %s16 = ssub.s32 1, %s14
  %s17 = scalar_select 0, %s16, %s14
  $region1: #{tpu_custom_call.1} parent=0
    #allocation3 [shape = 'u8[65536]{0}', space=vmem, size = 0x10000, scoped, tag = 'input window, operand 1, single buffered']
    #allocation4 [shape = 's32[1]{0}', space=sflag, size = 0x4, scoped, tag = 'scoped memory for tpu_custom_call.1']
    #allocation5 [shape = 's32[1]{0}', space=sflag, size = 0x4, scoped, tag = 'scoped memory for tpu_custom_call.1']
    #allocation6 [shape = 'u8[65536]{0}', space=vmem, size = 0x10000, scoped, tag = 'input window, operand 2, single buffered']
    #allocation7 [shape = 's32[1]{0}', space=sflag, size = 0x4, scoped, tag = 'scoped memory for tpu_custom_call.1']
    #allocation8 [shape = 'u8[4096]{0}', space=vmem, size = 0x1000, scoped, tag = 'output window, operand 0, single buffered']
    #allocation9 [shape = 'u8[4096]{0}', space=vmem, size = 0x1000, scoped, tag = 'output window, operand 1, single buffered']
    #allocation10 [shape = 's32[1]{0}', space=sflag, size = 0x4, scoped, tag = 'scoped memory for tpu_custom_call.1']
    %18 = vsyncpa [#allocation4], 0
    %19 = vsyncpa [#allocation7], 0
    %20 = vsyncpa [#allocation5], 0
    %21 = vsyncpa [#allocation10], 0
    // Predicated region
    $region2: #{tpu_custom_call.1} parent=1 // pred_check
      _
    $region3: #{tpu_custom_call.1} parent=1 // pred_check_branch
      %23 = sbr.rel (0) target = $region5
    $region4: #{tpu_custom_call.1} parent=1 // pred_region
      _
    $region5: #{tpu_custom_call.1} parent=1 // pred_fallthru
      _
    // Predicated region
    $region6: #{tpu_custom_call.1} parent=1 // pred_check
      _
    $region7: #{tpu_custom_call.1} parent=1 // pred_check_branch
      %25 = sbr.rel (0) target = $region9
    $region8: #{tpu_custom_call.1} parent=1 // pred_region
      %s27 = ssub.s32 2048, 2048
      %28 = vsyncadd [#allocation4], %s27
      %s29 = sshll.u32 [#allocation3], 4
      %s30 = int_to_ptr.vmem [resolvable:$true] %s29
      %35 = dma.hbm_to_vmem [thread:$0]  %s1, 2048, %s30, [#allocation4], 64, 64, 4
    $region9: #{tpu_custom_call.1} parent=1 // pred_fallthru
      _
    // Predicated region
    $region10: #{tpu_custom_call.1} parent=1 // pred_check
      _
    $region11: #{tpu_custom_call.1} parent=1 // pred_check_branch
      %37 = sbr.rel (0) target = $region13
    $region12: #{tpu_custom_call.1} parent=1 // pred_region
      %s39 = ssub.s32 2048, 2048
      %40 = vsyncadd [#allocation7], %s39
      %s41 = sshll.u32 [#allocation6], 4
      %s42 = int_to_ptr.vmem [resolvable:$true] %s41
      %47 = dma.hbm_to_vmem [thread:$0]  %s2, 2048, %s42, [#allocation7], 64, 64, 4
    $region13: #{tpu_custom_call.1} parent=1 // pred_fallthru
      _
    // Predicated region
    $region14: #{tpu_custom_call.1} parent=1 // pred_check
      _
    $region15: #{tpu_custom_call.1} parent=1 // pred_check_branch
      %49 = sbr.rel (0) target = $region17
    $region16: #{tpu_custom_call.1} parent=1 // pred_region
      _
    $region17: #{tpu_custom_call.1} parent=1 // pred_fallthru
      _
    // Predicated region
    $region18: #{tpu_custom_call.1} parent=1 // pred_check
      _
    $region19: #{tpu_custom_call.1} parent=1 // pred_check_branch
      %51 = sbr.rel (0) target = $region21
    $region20: #{tpu_custom_call.1} parent=1 // pred_region
      _
    $region21: #{tpu_custom_call.1} parent=1 // pred_fallthru
      _
    // Predicated region
    $region22: #{tpu_custom_call.1} parent=1 // pred_check
      _
    $region23: #{tpu_custom_call.1} parent=1 // pred_check_branch
      %53 = sbr.rel (0) target = $region25
    $region24: #{tpu_custom_call.1} parent=1 // pred_region
      _
    $region25: #{tpu_custom_call.1} parent=1 // pred_fallthru
      _
    // Predicated region
    $region26: #{tpu_custom_call.1} parent=1 // pred_check
      _
    $region27: #{tpu_custom_call.1} parent=1 // pred_check_branch
      %55 = sbr.rel (0) target = $region29
    $region28: #{tpu_custom_call.1} parent=1 // pred_region
      _
    $region29: #{tpu_custom_call.1} parent=1 // pred_fallthru
      _
    // Predicated region
    $region30: #{tpu_custom_call.1} parent=1 // pred_check
      _
    $region31: #{tpu_custom_call.1} parent=1 // pred_check_branch
      %57 = sbr.rel (0) target = $region33
    $region32: #{tpu_custom_call.1} parent=1 // pred_region
      _
    $region33: #{tpu_custom_call.1} parent=1 // pred_fallthru
      _
    // Predicated region
    $region34: #{tpu_custom_call.1} parent=1 // pred_check
      _
    $region35: #{tpu_custom_call.1} parent=1 // pred_check_branch
      %59 = sbr.rel (0) target = $region37
    $region36: #{tpu_custom_call.1} parent=1 // pred_region
      _
    $region37: #{tpu_custom_call.1} parent=1 // pred_fallthru
      _
    // Predicated region
    $region38: #{tpu_custom_call.1} parent=1 // pred_check
      _
    $region39: #{tpu_custom_call.1} parent=1 // pred_check_branch
      %61 = sbr.rel (0) target = $region41
    $region40: #{tpu_custom_call.1} parent=1 // pred_region
      %62 = dma.done [#allocation4], 2048
    $region41: #{tpu_custom_call.1} parent=1 // pred_fallthru
      _
    // Predicated region
    $region42: #{tpu_custom_call.1} parent=1 // pred_check
      _
    $region43: #{tpu_custom_call.1} parent=1 // pred_check_branch
      %64 = sbr.rel (0) target = $region45
    $region44: #{tpu_custom_call.1} parent=1 // pred_region
      %65 = dma.done [#allocation7], 2048
    $region45: #{tpu_custom_call.1} parent=1 // pred_fallthru
      _
    %p66 = scmp.eq.s32.totalorder 0, 0
    // Predicated region
    $region46: #{tpu_custom_call.1} parent=1 // pred_check
      %p67 = pneg %p66
    $region47: #{tpu_custom_call.1} parent=1 // pred_check_branch
      %69 = sbr.rel (%p67) target = $region49
    $region48: #{tpu_custom_call.1} parent=1 // pred_region
      %v70 = vld [vmem:[%s0] sm:$0xff]
      %v71 = vld [vmem:[%s5] sm:$0xff]
      %v72 = vld [vmem:[%s5 + $0x8] sm:$0xff]
      %v73 = vld [vmem:[%s5 + $0x10] sm:$0xff]
      %v74 = vld [vmem:[%s5 + $0x18] sm:$0xff]
      %v75 = vld [vmem:[%s6] sm:$0x1]
      %v77 = vlaneseq
      %v78 = vshrl.u32 %v77, 7
      %v79 = vsub.s32 0, %v78
      %v80 = vrot.slane %v75, %v79
      %vm82 = vcmask 261120
      %v84 = vsel %vm82, %v70, 0
      %86 = vmatprep.subr.mxu0 0.0
      %87 = vmatpush1.msra.mxu0 %v71
      %88 = vmatprep.subr.mxu0 0.0
      %89 = vmatpush1.msra.mxu0 %v72
      %90 = vmatprep.subr.mxu0 0.0
      %91 = vmatpush1.msra.mxu0 %v73
      %92 = vmatprep.subr.mxu0 0.0
      %93 = vmatpush1.msra.mxu0 %v74
      %94 = vmatprep.subr.mxu0 0.0
      %95 = vmatpush1.msra.mxu0 0.0
      %96 = vmatprep.subr.mxu0 0.0
      %97 = vmatpush1.msra.mxu0 0.0
      %98 = vmatprep.subr.mxu0 0.0
      %99 = vmatpush1.msra.mxu0 0.0
      %100 = vmatprep.subr.mxu0 0.0
      %101 = vmatpush1.msra.mxu0 0.0
      %102 = vmatprep.subr.mxu0 0.0
      %103 = vmatpush1.msra.mxu0 0.0
      %104 = vmatprep.subr.mxu0 0.0
      %105 = vmatpush1.msra.mxu0 0.0
      %106 = vmatprep.subr.mxu0 0.0
      %107 = vmatpush1.msra.mxu0 0.0
      %108 = vmatprep.subr.mxu0 0.0
      %109 = vmatpush1.msra.mxu0 0.0
      %110 = vmatprep.subr.mxu0 0.0
      %111 = vmatpush1.msra.mxu0 0.0
      %112 = vmatprep.subr.mxu0 0.0
      %113 = vmatpush1.msra.mxu0 0.0
      %114 = vmatprep.subr.mxu0 0.0
      %115 = vmatpush1.msra.mxu0 0.0
      %116 = vmatprep.subr.mxu0 0.0
      %117 = vmatpush1.msra.mxu0 0.0
      %118 = vmatprep.subr.mxu0 0.0
      %119 = vmatpush1.msra.mxu0 0.0
      %120 = vmatprep.subr.mxu0 0.0
      %121 = vmatpush1.msra.mxu0 0.0
      %122 = vmatprep.subr.mxu0 0.0
      %123 = vmatpush1.msra.mxu0 0.0
      %124 = vmatprep.subr.mxu0 0.0
      %125 = vmatpush1.msra.mxu0 0.0
      %126 = vmatprep.subr.mxu0 0.0
      %127 = vmatpush1.msra.mxu0 0.0
      %128 = vmatprep.subr.mxu0 0.0
      %129 = vmatpush1.msra.mxu0 0.0
      %130 = vmatprep.subr.mxu0 0.0
      %131 = vmatpush1.msra.mxu0 0.0
      %132 = vmatprep.subr.mxu0 0.0
      %133 = vmatpush1.msra.mxu0 0.0
      %134 = vmatprep.subr.mxu0 0.0
      %135 = vmatpush1.msra.mxu0 0.0
      %136 = vmatprep.subr.mxu0 0.0
      %137 = vmatpush1.msra.mxu0 0.0
      %138 = vmatprep.subr.mxu0 0.0
      %139 = vmatpush1.msra.mxu0 0.0
      %140 = vmatprep.subr.mxu0 0.0
      %141 = vmatpush1.msra.mxu0 0.0
      %142 = vmatprep.subr.mxu0 0.0
      %143 = vmatpush1.msra.mxu0 0.0
      %144 = vmatprep.subr.mxu0 0.0
      %145 = vmatpush1.msra.mxu0 0.0
      %146 = vmatprep.subr.mxu0 0.0
      %147 = vmatpush1.msra.mxu0 0.0
      %148 = vmatprep.subr.mxu0 0.0
      %149 = vmatpush1.msra.mxu0 0.0
      %150 = vmatprep.mubr.f32.mxu0 0.0
      %151 = vmatmul.mubr.f32.gmra.mrb[0].mxu0 %v84
      %v152 = vpop.f32.mrb[0].mxu0
      %v153 = vadd.f32 %v80, %v152
      %v154 = vpop.f32.mrb[0].mxu0
      %155 = vdwg.mxu0
      %156 = vst.msk [vmem:[#allocation2] sm:$0xff] %vm82, %v153
      %vm157 = vcmask 7168
      %158 = vst.msk [vmem:[%s11] sm:$0xff] %vm157, -inf
      %159 = vst.msk [vmem:[%s12] sm:$0xff] %vm157, 0.0
      %160 = vst.msk [vmem:[#allocation9] sm:$0xff] %vm82, 0.0
    $region49: #{tpu_custom_call.1} parent=1 // pred_fallthru
      _
    %v161 = vld [vmem:[%s3] sm:$0xff]
    %v162 = vld [vmem:[%s4] sm:$0xff]
    %v163 = vld [vmem:[#allocation6] sm:$0xf]
    %v164 = vld [vmem:[#allocation6 + $0x4] sm:$0xf]
    %v165 = vld [vmem:[#allocation6 + $0x8] sm:$0xf]
    %v166 = vld [vmem:[#allocation6 + $0xc] sm:$0xf]
    %v167 = vld [vmem:[#allocation6 + $0x10] sm:$0xf]
    %v168 = vld [vmem:[#allocation6 + $0x14] sm:$0xf]
    %v169 = vld [vmem:[#allocation6 + $0x18] sm:$0xf]
    %v170 = vld [vmem:[#allocation6 + $0x1c] sm:$0xf]
    %v171 = vld [vmem:[#allocation6 + $0x20] sm:$0xf]
    %v172 = vld [vmem:[#allocation6 + $0x24] sm:$0xf]
    %v173 = vld [vmem:[#allocation6 + $0x28] sm:$0xf]
    %v174 = vld [vmem:[#allocation6 + $0x2c] sm:$0xf]
    %v175 = vld [vmem:[#allocation6 + $0x30] sm:$0xf]
    %v176 = vld [vmem:[#allocation6 + $0x34] sm:$0xf]
    %v177 = vld [vmem:[#allocation6 + $0x38] sm:$0xf]
    %v178 = vld [vmem:[#allocation6 + $0x3c] sm:$0xf]
    %v179 = vld [vmem:[#allocation6 + $0x40] sm:$0xf]
    %v180 = vld [vmem:[#allocation6 + $0x44] sm:$0xf]
    %v181 = vld [vmem:[#allocation6 + $0x48] sm:$0xf]
    %v182 = vld [vmem:[#allocation6 + $0x4c] sm:$0xf]
    %v183 = vld [vmem:[#allocation6 + $0x50] sm:$0xf]
    %v184 = vld [vmem:[#allocation6 + $0x54] sm:$0xf]
    %v185 = vld [vmem:[#allocation6 + $0x58] sm:$0xf]
    %v186 = vld [vmem:[#allocation6 + $0x5c] sm:$0xf]
    %v187 = vld [vmem:[#allocation6 + $0x60] sm:$0xf]
    %v188 = vld [vmem:[#allocation6 + $0x64] sm:$0xf]
    %v189 = vld [vmem:[#allocation6 + $0x68] sm:$0xf]
    %v190 = vld [vmem:[#allocation6 + $0x6c] sm:$0xf]
    %v191 = vld [vmem:[#allocation6 + $0x70] sm:$0xf]
    %v192 = vld [vmem:[#allocation6 + $0x74] sm:$0xf]
    %v193 = vld [vmem:[#allocation6 + $0x78] sm:$0xf]
    %v194 = vld [vmem:[#allocation6 + $0x7c] sm:$0xf]
    %v195 = vunpack.c.l.bf16 %v163
    %v196 = vunpack.c.l.bf16 %v164
    %v197 = vunpack.c.l.bf16 %v165
    %v198 = vunpack.c.l.bf16 %v166
    %v199 = vunpack.c.l.bf16 %v167
    %v200 = vunpack.c.l.bf16 %v168
    %v201 = vunpack.c.l.bf16 %v169
    %v202 = vunpack.c.l.bf16 %v170
    %v203 = vunpack.c.l.bf16 %v171
    %v204 = vunpack.c.l.bf16 %v172
    %v205 = vunpack.c.l.bf16 %v173
    %v206 = vunpack.c.l.bf16 %v174
    %v207 = vunpack.c.l.bf16 %v175
    %v208 = vunpack.c.l.bf16 %v176
    %v209 = vunpack.c.l.bf16 %v177
    %v210 = vunpack.c.l.bf16 %v178
    %v211 = vunpack.c.l.bf16 %v179
    %v212 = vunpack.c.l.bf16 %v180
    %v213 = vunpack.c.l.bf16 %v181
    %v214 = vunpack.c.l.bf16 %v182
    %v215 = vunpack.c.l.bf16 %v183
    %v216 = vunpack.c.l.bf16 %v184
    %v217 = vunpack.c.l.bf16 %v185
    %v218 = vunpack.c.l.bf16 %v186
    %v219 = vunpack.c.l.bf16 %v187
    %v220 = vunpack.c.l.bf16 %v188
    %v221 = vunpack.c.l.bf16 %v189
    %v222 = vunpack.c.l.bf16 %v190
    %v223 = vunpack.c.l.bf16 %v191
    %v224 = vunpack.c.l.bf16 %v192
    %v225 = vunpack.c.l.bf16 %v193
    %v226 = vunpack.c.l.bf16 %v194
    %v227 = vld [vmem:[#allocation2] sm:$0xff]
    %v228 = vlaneseq
    %v229 = vshrl.u32 %v228, 7
    %v230 = vsub.s32 0, %v229
    %v231 = vrot.slane %v227, %v230
    %233 = vbcast.lane.b32.xlu0 %v231, 256
    %v234 = vpop.permute.xlu0 %233
    %s236 = sor.u32 256, 8
    %237 = vbcast.lane.b32.xlu0 %v231, %s236
    %v238 = vpop.permute.xlu0 %237
    %s240 = sor.u32 256, 16
    %241 = vbcast.lane.b32.xlu0 %v231, %s240
    %v242 = vpop.permute.xlu0 %241
    %s244 = sor.u32 256, 24
    %245 = vbcast.lane.b32.xlu0 %v231, %s244
    %v246 = vpop.permute.xlu0 %245
    %v247 = vlaneseq
    %v248 = vshrl.u32 %v247, 7
    %v249 = vsub.s32 1, %v248
    %v250 = vrot.slane %v227, %v249
    %252 = vbcast.lane.b32.xlu0 %v250, 256
    %v253 = vpop.permute.xlu0 %252
    %s255 = sor.u32 256, 8
    %256 = vbcast.lane.b32.xlu0 %v250, %s255
    %v257 = vpop.permute.xlu0 %256
    %s259 = sor.u32 256, 16
    %260 = vbcast.lane.b32.xlu0 %v250, %s259
    %v261 = vpop.permute.xlu0 %260
    %s263 = sor.u32 256, 24
    %264 = vbcast.lane.b32.xlu0 %v250, %s263
    %v265 = vpop.permute.xlu0 %264
    %v266 = vlaneseq
    %v267 = vshrl.u32 %v266, 7
    %v268 = vsub.s32 2, %v267
    %v269 = vrot.slane %v227, %v268
    %271 = vbcast.lane.b32.xlu0 %v269, 256
    %v272 = vpop.permute.xlu0 %271
    %s274 = sor.u32 256, 8
    %275 = vbcast.lane.b32.xlu0 %v269, %s274
    %v276 = vpop.permute.xlu0 %275
    %s278 = sor.u32 256, 16
    %279 = vbcast.lane.b32.xlu0 %v269, %s278
    %v280 = vpop.permute.xlu0 %279
    %s282 = sor.u32 256, 24
    %283 = vbcast.lane.b32.xlu0 %v269, %s282
    %v284 = vpop.permute.xlu0 %283
    %v285 = vlaneseq
    %v286 = vshrl.u32 %v285, 7
    %v287 = vsub.s32 3, %v286
    %v288 = vrot.slane %v227, %v287
    %290 = vbcast.lane.b32.xlu0 %v288, 256
    %v291 = vpop.permute.xlu0 %290
    %s293 = sor.u32 256, 8
    %294 = vbcast.lane.b32.xlu0 %v288, %s293
    %v295 = vpop.permute.xlu0 %294
    %s297 = sor.u32 256, 16
    %298 = vbcast.lane.b32.xlu0 %v288, %s297
    %v299 = vpop.permute.xlu0 %298
    %s301 = sor.u32 256, 24
    %302 = vbcast.lane.b32.xlu0 %v288, %s301
    %v303 = vpop.permute.xlu0 %302
    %v304 = vlaneseq
    %v305 = vshrl.u32 %v304, 7
    %v306 = vsub.s32 4, %v305
    %v307 = vrot.slane %v227, %v306
    %309 = vbcast.lane.b32.xlu0 %v307, 256
    %v310 = vpop.permute.xlu0 %309
    %s312 = sor.u32 256, 8
    %313 = vbcast.lane.b32.xlu0 %v307, %s312
    %v314 = vpop.permute.xlu0 %313
    %s316 = sor.u32 256, 16
    %317 = vbcast.lane.b32.xlu0 %v307, %s316
    %v318 = vpop.permute.xlu0 %317
    %s320 = sor.u32 256, 24
    %321 = vbcast.lane.b32.xlu0 %v307, %s320
    %v322 = vpop.permute.xlu0 %321
    %v323 = vlaneseq
    %v324 = vshrl.u32 %v323, 7
    %v325 = vsub.s32 5, %v324
    %v326 = vrot.slane %v227, %v325
    %328 = vbcast.lane.b32.xlu0 %v326, 256
    %v329 = vpop.permute.xlu0 %328
    %s331 = sor.u32 256, 8
    %332 = vbcast.lane.b32.xlu0 %v326, %s331
    %v333 = vpop.permute.xlu0 %332
    %s335 = sor.u32 256, 16
    %336 = vbcast.lane.b32.xlu0 %v326, %s335
    %v337 = vpop.permute.xlu0 %336
    %s339 = sor.u32 256, 24
    %340 = vbcast.lane.b32.xlu0 %v326, %s339
    %v341 = vpop.permute.xlu0 %340
    %v342 = vlaneseq
    %v343 = vshrl.u32 %v342, 7
    %v344 = vsub.s32 6, %v343
    %v345 = vrot.slane %v227, %v344
    %347 = vbcast.lane.b32.xlu0 %v345, 256
    %v348 = vpop.permute.xlu0 %347
    %s350 = sor.u32 256, 8
    %351 = vbcast.lane.b32.xlu0 %v345, %s350
    %v352 = vpop.permute.xlu0 %351
    %s354 = sor.u32 256, 16
    %355 = vbcast.lane.b32.xlu0 %v345, %s354
    %v356 = vpop.permute.xlu0 %355
    %s358 = sor.u32 256, 24
    %359 = vbcast.lane.b32.xlu0 %v345, %s358
    %v360 = vpop.permute.xlu0 %359
    %v361 = vlaneseq
    %v362 = vshrl.u32 %v361, 7
    %v363 = vsub.s32 7, %v362
    %v364 = vrot.slane %v227, %v363
    %366 = vbcast.lane.b32.xlu0 %v364, 256
    %v367 = vpop.permute.xlu0 %366
    %s369 = sor.u32 256, 8
    %370 = vbcast.lane.b32.xlu0 %v364, %s369
    %v371 = vpop.permute.xlu0 %370
    %s373 = sor.u32 256, 16
    %374 = vbcast.lane.b32.xlu0 %v364, %s373
    %v375 = vpop.permute.xlu0 %374
    %s377 = sor.u32 256, 24
    %378 = vbcast.lane.b32.xlu0 %v364, %s377
    %v379 = vpop.permute.xlu0 %378
    %v380 = vadd.f32 %v195, %v234
    %v381 = vadd.f32 %v196, %v238
    %v382 = vadd.f32 %v197, %v242
    %v383 = vadd.f32 %v198, %v246
    %v384 = vadd.f32 %v199, %v253
    %v385 = vadd.f32 %v200, %v257
    %v386 = vadd.f32 %v201, %v261
    %v387 = vadd.f32 %v202, %v265
    %v388 = vadd.f32 %v203, %v272
    %v389 = vadd.f32 %v204, %v276
    %v390 = vadd.f32 %v205, %v280
    %v391 = vadd.f32 %v206, %v284
    %v392 = vadd.f32 %v207, %v291
    %v393 = vadd.f32 %v208, %v295
    %v394 = vadd.f32 %v209, %v299
    %v395 = vadd.f32 %v210, %v303
    %v396 = vadd.f32 %v211, %v310
    %v397 = vadd.f32 %v212, %v314
    %v398 = vadd.f32 %v213, %v318
    %v399 = vadd.f32 %v214, %v322
    %v400 = vadd.f32 %v215, %v329
    %v401 = vadd.f32 %v216, %v333
    %v402 = vadd.f32 %v217, %v337
    %v403 = vadd.f32 %v218, %v341
    %v404 = vadd.f32 %v219, %v348
    %v405 = vadd.f32 %v220, %v352
    %v406 = vadd.f32 %v221, %v356
    %v407 = vadd.f32 %v222, %v360
    %v408 = vadd.f32 %v223, %v367
    %v409 = vadd.f32 %v224, %v371
    %v410 = vadd.f32 %v225, %v375
    %v411 = vadd.f32 %v226, %v379
    %v413 = vcombine.high %v162, %v162
    %v415 = vunpack.c.l.s4 1966171168
    %v416 = vunpack.c.0.s8 %v415
    %v417 = vlaneseq
    %v418 = vshrl.u32 %v417, 7
    %v419 = vsub.s32 %v416, %v418
    %v420 = vrot.slane %v162, %v419
    %v422 = vunpack.c.l.s4 1966171168
    %v423 = vunpack.c.0.s8 %v422
    %v424 = vlaneseq
    %v425 = vshrl.u32 %v424, 7
    %v426 = vsub.s32 %v423, %v425
    %v427 = vrot.slane %v413, %v426
    %v428 = vcombine.high %v420, %v420
    %v429 = vcombine.high %v427, %v427
    %v431 = vunpack.c.l.s4 1966171168
    %v432 = vunpack.c.0.s8 %v431
    %v433 = vlaneseq
    %v434 = vshrl.u32 %v433, 7
    %v435 = vsub.s32 %v432, %v434
    %v436 = vrot.slane %v420, %v435
    %v438 = vunpack.c.l.s4 1966171168
    %v439 = vunpack.c.0.s8 %v438
    %v440 = vlaneseq
    %v441 = vshrl.u32 %v440, 7
    %v442 = vsub.s32 %v439, %v441
    %v443 = vrot.slane %v427, %v442
    %v445 = vunpack.c.l.s4 1966171168
    %v446 = vunpack.c.0.s8 %v445
    %v447 = vlaneseq
    %v448 = vshrl.u32 %v447, 7
    %v449 = vsub.s32 %v446, %v448
    %v450 = vrot.slane %v428, %v449
    %v452 = vunpack.c.l.s4 1966171168
    %v453 = vunpack.c.0.s8 %v452
    %v454 = vlaneseq
    %v455 = vshrl.u32 %v454, 7
    %v456 = vsub.s32 %v453, %v455
    %v457 = vrot.slane %v429, %v456
    %v458 = vcombine.high %v436, %v436
    %v459 = vcombine.high %v443, %v443
    %v460 = vcombine.high %v450, %v450
    %v461 = vcombine.high %v457, %v457
    %v462 = vld [vmem:[%s7] sm:$0xff]
    %v463 = vld [vmem:[%s7 + $0x8] sm:$0xff]
    %v464 = vld [vmem:[%s7 + $0x10] sm:$0xff]
    %v465 = vld [vmem:[%s7 + $0x18] sm:$0xff]
    %v466 = vlaneseq
    %v467 = vshrl.u32 %v466, 7
    %v468 = vsub.s32 0, %v467
    %v469 = vrot.slane %v436, %v468
    %v470 = vlaneseq
    %v471 = vshrl.u32 %v470, 7
    %v472 = vsub.s32 0, %v471
    %v473 = vrot.slane %v450, %v472
    %v474 = vlaneseq
    %v475 = vshrl.u32 %v474, 7
    %v476 = vsub.s32 0, %v475
    %v477 = vrot.slane %v458, %v476
    %v478 = vlaneseq
    %v479 = vshrl.u32 %v478, 7
    %v480 = vsub.s32 0, %v479
    %v481 = vrot.slane %v460, %v480
    %v482 = vlaneseq
    %v483 = vshrl.u32 %v482, 7
    %v484 = vsub.s32 0, %v483
    %v485 = vrot.slane %v443, %v484
    %v486 = vlaneseq
    %v487 = vshrl.u32 %v486, 7
    %v488 = vsub.s32 0, %v487
    %v489 = vrot.slane %v457, %v488
    %v490 = vlaneseq
    %v491 = vshrl.u32 %v490, 7
    %v492 = vsub.s32 0, %v491
    %v493 = vrot.slane %v459, %v492
    %v494 = vlaneseq
    %v495 = vshrl.u32 %v494, 7
    %v496 = vsub.s32 0, %v495
    %v497 = vrot.slane %v461, %v496
    %507 = vset.pattern.permute.xlu0 0
    %508 = vperm.xlu0 %507, %v462
    %v509 = vpop.permute.xlu0 %508
    %512 = vset.pattern.permute.xlu0 0
    %513 = vperm.xlu0 %512, %v463
    %v514 = vpop.permute.xlu0 %513
    %517 = vset.pattern.permute.xlu0 0
    %518 = vperm.xlu0 %517, %v464
    %v519 = vpop.permute.xlu0 %518
    %522 = vset.pattern.permute.xlu0 0
    %523 = vperm.xlu0 %522, %v465
    %v524 = vpop.permute.xlu0 %523
    %v526 = vmul.f32 %v469, %v509
    %v527 = vmul.f32 %v469, %v514
    %v528 = vmul.f32 %v469, %v519
    %v529 = vmul.f32 %v469, %v524
    %v530 = vmul.f32 %v473, %v509
    %v531 = vmul.f32 %v473, %v514
    %v532 = vmul.f32 %v473, %v519
    %v533 = vmul.f32 %v473, %v524
    %v534 = vmul.f32 %v477, %v509
    %v535 = vmul.f32 %v477, %v514
    %v536 = vmul.f32 %v477, %v519
    %v537 = vmul.f32 %v477, %v524
    %v538 = vmul.f32 %v481, %v509
    %v539 = vmul.f32 %v481, %v514
    %v540 = vmul.f32 %v481, %v519
    %v541 = vmul.f32 %v481, %v524
    %v542 = vmul.f32 %v485, %v509
    %v543 = vmul.f32 %v485, %v514
    %v544 = vmul.f32 %v485, %v519
    %v545 = vmul.f32 %v485, %v524
    %v546 = vmul.f32 %v489, %v509
    %v547 = vmul.f32 %v489, %v514
    %v548 = vmul.f32 %v489, %v519
    %v549 = vmul.f32 %v489, %v524
    %v550 = vmul.f32 %v493, %v509
    %v551 = vmul.f32 %v493, %v514
    %v552 = vmul.f32 %v493, %v519
    %v553 = vmul.f32 %v493, %v524
    %v554 = vmul.f32 %v497, %v509
    %v555 = vmul.f32 %v497, %v514
    %v556 = vmul.f32 %v497, %v519
    %v557 = vmul.f32 %v497, %v524
    %v558 = vadd.f32 %v380, %v526
    %v559 = vadd.f32 %v381, %v527
    %v560 = vadd.f32 %v382, %v528
    %v561 = vadd.f32 %v383, %v529
    %v562 = vadd.f32 %v384, %v530
    %v563 = vadd.f32 %v385, %v531
    %v564 = vadd.f32 %v386, %v532
    %v565 = vadd.f32 %v387, %v533
    %v566 = vadd.f32 %v388, %v534
    %v567 = vadd.f32 %v389, %v535
    %v568 = vadd.f32 %v390, %v536
    %v569 = vadd.f32 %v391, %v537
    %v570 = vadd.f32 %v392, %v538
    %v571 = vadd.f32 %v393, %v539
    %v572 = vadd.f32 %v394, %v540
    %v573 = vadd.f32 %v395, %v541
    %v574 = vadd.f32 %v396, %v542
    %v575 = vadd.f32 %v397, %v543
    %v576 = vadd.f32 %v398, %v544
    %v577 = vadd.f32 %v399, %v545
    %v578 = vadd.f32 %v400, %v546
    %v579 = vadd.f32 %v401, %v547
    %v580 = vadd.f32 %v402, %v548
    %v581 = vadd.f32 %v403, %v549
    %v582 = vadd.f32 %v404, %v550
    %v583 = vadd.f32 %v405, %v551
    %v584 = vadd.f32 %v406, %v552
    %v585 = vadd.f32 %v407, %v553
    %v586 = vadd.f32 %v408, %v554
    %v587 = vadd.f32 %v409, %v555
    %v588 = vadd.f32 %v410, %v556
    %v589 = vadd.f32 %v411, %v557
    %v590 = vtanh.pop %v558
    %v591 = vtanh.pop %v559
    %v592 = vtanh.pop %v560
    %v593 = vtanh.pop %v561
    %v594 = vtanh.pop %v562
    %v595 = vtanh.pop %v563
    %v596 = vtanh.pop %v564
    %v597 = vtanh.pop %v565
    %v598 = vtanh.pop %v566
    %v599 = vtanh.pop %v567
    %v600 = vtanh.pop %v568
    %v601 = vtanh.pop %v569
    %v602 = vtanh.pop %v570
    %v603 = vtanh.pop %v571
    %v604 = vtanh.pop %v572
    %v605 = vtanh.pop %v573
    %v606 = vtanh.pop %v574
    %v607 = vtanh.pop %v575
    %v608 = vtanh.pop %v576
    %v609 = vtanh.pop %v577
    %v610 = vtanh.pop %v578
    %v611 = vtanh.pop %v579
    %v612 = vtanh.pop %v580
    %v613 = vtanh.pop %v581
    %v614 = vtanh.pop %v582
    %v615 = vtanh.pop %v583
    %v616 = vtanh.pop %v584
    %v617 = vtanh.pop %v585
    %v618 = vtanh.pop %v586
    %v619 = vtanh.pop %v587
    %v620 = vtanh.pop %v588
    %v621 = vtanh.pop %v589
    %v622 = vld [vmem:[%s8] sm:$0xff]
    %v623 = vld [vmem:[%s8 + $0x8] sm:$0xff]
    %v624 = vld [vmem:[%s8 + $0x10] sm:$0xff]
    %v625 = vld [vmem:[%s8 + $0x18] sm:$0xff]
    %627 = vset.pattern.permute.xlu0 0
    %628 = vperm.xlu0 %627, %v622
    %v629 = vpop.permute.xlu0 %628
    %632 = vset.pattern.permute.xlu0 0
    %633 = vperm.xlu0 %632, %v623
    %v634 = vpop.permute.xlu0 %633
    %637 = vset.pattern.permute.xlu0 0
    %638 = vperm.xlu0 %637, %v624
    %v639 = vpop.permute.xlu0 %638
    %642 = vset.pattern.permute.xlu0 0
    %643 = vperm.xlu0 %642, %v625
    %v644 = vpop.permute.xlu0 %643
    %v646 = vmul.f32 %v590, %v629
    %v647 = vmul.f32 %v591, %v634
    %v648 = vmul.f32 %v592, %v639
    %v649 = vmul.f32 %v593, %v644
    %v650 = vmul.f32 %v594, %v629
    %v651 = vmul.f32 %v595, %v634
    %v652 = vmul.f32 %v596, %v639
    %v653 = vmul.f32 %v597, %v644
    %v654 = vmul.f32 %v598, %v629
    %v655 = vmul.f32 %v599, %v634
    %v656 = vmul.f32 %v600, %v639
    %v657 = vmul.f32 %v601, %v644
    %v658 = vmul.f32 %v602, %v629
    %v659 = vmul.f32 %v603, %v634
    %v660 = vmul.f32 %v604, %v639
    %v661 = vmul.f32 %v605, %v644
    %v662 = vmul.f32 %v606, %v629
    %v663 = vmul.f32 %v607, %v634
    %v664 = vmul.f32 %v608, %v639
    %v665 = vmul.f32 %v609, %v644
    %v666 = vmul.f32 %v610, %v629
    %v667 = vmul.f32 %v611, %v634
    %v668 = vmul.f32 %v612, %v639
    %v669 = vmul.f32 %v613, %v644
    %v670 = vmul.f32 %v614, %v629
    %v671 = vmul.f32 %v615, %v634
    %v672 = vmul.f32 %v616, %v639
    %v673 = vmul.f32 %v617, %v644
    %v674 = vmul.f32 %v618, %v629
    %v675 = vmul.f32 %v619, %v634
    %v676 = vmul.f32 %v620, %v639
    %v677 = vmul.f32 %v621, %v644
    %v678 = vadd.f32 %v646, %v647
    %v679 = vadd.f32 %v678, %v648
    %v680 = vadd.f32 %v679, %v649
    %v681 = vrot.slane %v680, 4
    %v682 = vadd.f32 %v680, %v681
    %v683 = vrot.slane %v682, 2
    %v684 = vadd.f32 %v682, %v683
    %v685 = vrot.slane %v684, 1
    %v686 = vadd.f32 %v684, %v685
    %v687 = vadd.f32 %v650, %v651
    %v688 = vadd.f32 %v687, %v652
    %v689 = vadd.f32 %v688, %v653
    %v690 = vrot.slane %v689, 4
    %v691 = vadd.f32 %v689, %v690
    %v692 = vrot.slane %v691, 2
    %v693 = vadd.f32 %v691, %v692
    %v694 = vrot.slane %v693, 1
    %v695 = vadd.f32 %v693, %v694
    %v696 = vadd.f32 %v654, %v655
    %v697 = vadd.f32 %v696, %v656
    %v698 = vadd.f32 %v697, %v657
    %v699 = vrot.slane %v698, 4
    %v700 = vadd.f32 %v698, %v699
    %v701 = vrot.slane %v700, 2
    %v702 = vadd.f32 %v700, %v701
    %v703 = vrot.slane %v702, 1
    %v704 = vadd.f32 %v702, %v703
    %v705 = vadd.f32 %v658, %v659
    %v706 = vadd.f32 %v705, %v660
    %v707 = vadd.f32 %v706, %v661
    %v708 = vrot.slane %v707, 4
    %v709 = vadd.f32 %v707, %v708
    %v710 = vrot.slane %v709, 2
    %v711 = vadd.f32 %v709, %v710
    %v712 = vrot.slane %v711, 1
    %v713 = vadd.f32 %v711, %v712
    %v714 = vadd.f32 %v662, %v663
    %v715 = vadd.f32 %v714, %v664
    %v716 = vadd.f32 %v715, %v665
    %v717 = vrot.slane %v716, 4
    %v718 = vadd.f32 %v716, %v717
    %v719 = vrot.slane %v718, 2
    %v720 = vadd.f32 %v718, %v719
    %v721 = vrot.slane %v720, 1
    %v722 = vadd.f32 %v720, %v721
    %v723 = vadd.f32 %v666, %v667
    %v724 = vadd.f32 %v723, %v668
    %v725 = vadd.f32 %v724, %v669
    %v726 = vrot.slane %v725, 4
    %v727 = vadd.f32 %v725, %v726
    %v728 = vrot.slane %v727, 2
    %v729 = vadd.f32 %v727, %v728
    %v730 = vrot.slane %v729, 1
    %v731 = vadd.f32 %v729, %v730
    %v732 = vadd.f32 %v670, %v671
    %v733 = vadd.f32 %v732, %v672
    %v734 = vadd.f32 %v733, %v673
    %v735 = vrot.slane %v734, 4
    %v736 = vadd.f32 %v734, %v735
    %v737 = vrot.slane %v736, 2
    %v738 = vadd.f32 %v736, %v737
    %v739 = vrot.slane %v738, 1
    %v740 = vadd.f32 %v738, %v739
    %v741 = vadd.f32 %v674, %v675
    %v742 = vadd.f32 %v741, %v676
    %v743 = vadd.f32 %v742, %v677
    %v744 = vrot.slane %v743, 4
    %v745 = vadd.f32 %v743, %v744
    %v746 = vrot.slane %v745, 2
    %v747 = vadd.f32 %v745, %v746
    %v748 = vrot.slane %v747, 1
    %v749 = vadd.f32 %v747, %v748
    %vm758 = vcmask 1041409
    %v759 = vsel %vm758, %v695, %v686
    %vm760 = vcmask 1042434
    %v761 = vsel %vm760, %v704, %v759
    %vm762 = vcmask 1043459
    %v763 = vsel %vm762, %v713, %v761
    %vm764 = vcmask 1044484
    %v765 = vsel %vm764, %v722, %v763
    %vm766 = vcmask 1045509
    %v767 = vsel %vm766, %v731, %v765
    %vm768 = vcmask 1046534
    %v769 = vsel %vm768, %v740, %v767
    %vm770 = vcmask 1047559
    %v771 = vsel %vm770, %v749, %v769
    %773 = vst [vmem:[#allocation8] sm:$0xff] %v771
    %v774 = vld [vmem:[%s11] sm:$0xff]
    %775 = vmax.xlane.f32.xlu0 %v771
    %v776 = vpop.xlane.xlu0 %775
    %v777 = vmax.f32 %v774, %v776
    %v778 = vsub.f32 %v774, %v777
    %v779 = vmul.f32 %v778, 1.442695
    %v780 = vpow.pop %v779
    %782 = vset.pattern.permute.xlu0 0
    %783 = vperm.xlu0 %782, %v777
    %v784 = vpop.permute.xlu0 %783
    %v785 = vrot.slane %v784, 1
    %v786 = vrot.slane %v784, 2
    %v787 = vrot.slane %v784, 3
    %v788 = vrot.slane %v784, 4
    %v789 = vrot.slane %v784, 5
    %v790 = vrot.slane %v784, 6
    %v791 = vrot.slane %v784, 7
    %v800 = vsub.f32 %v686, %v784
    %v801 = vsub.f32 %v695, %v785
    %v802 = vsub.f32 %v704, %v786
    %v803 = vsub.f32 %v713, %v787
    %v804 = vsub.f32 %v722, %v788
    %v805 = vsub.f32 %v731, %v789
    %v806 = vsub.f32 %v740, %v790
    %v807 = vsub.f32 %v749, %v791
    %v808 = vmul.f32 %v800, 1.442695
    %v809 = vpow.pop %v808
    %v810 = vmul.f32 %v801, 1.442695
    %v811 = vpow.pop %v810
    %v812 = vmul.f32 %v802, 1.442695
    %v813 = vpow.pop %v812
    %v814 = vmul.f32 %v803, 1.442695
    %v815 = vpow.pop %v814
    %v816 = vmul.f32 %v804, 1.442695
    %v817 = vpow.pop %v816
    %v818 = vmul.f32 %v805, 1.442695
    %v819 = vpow.pop %v818
    %v820 = vmul.f32 %v806, 1.442695
    %v821 = vpow.pop %v820
    %v822 = vmul.f32 %v807, 1.442695
    %v823 = vpow.pop %v822
    %v825 = vrot.slane %v161, 1
    %v826 = vrot.slane %v161, 2
    %v827 = vrot.slane %v161, 3
    %v828 = vrot.slane %v161, 4
    %v829 = vrot.slane %v161, 5
    %v830 = vrot.slane %v161, 6
    %v831 = vrot.slane %v161, 7
    %v840 = vmul.f32 %v809, %v161
    %v841 = vmul.f32 %v811, %v825
    %v842 = vmul.f32 %v813, %v826
    %v843 = vmul.f32 %v815, %v827
    %v844 = vmul.f32 %v817, %v828
    %v845 = vmul.f32 %v819, %v829
    %v846 = vmul.f32 %v821, %v830
    %v847 = vmul.f32 %v823, %v831
    %v848 = vld [vmem:[%s12] sm:$0xff]
    %v849 = vmul.f32 %v780, %v848
    %v858 = vrot.slane %v841, 7
    %v859 = vsel %vm758, %v858, %v840
    %v860 = vrot.slane %v842, 6
    %v861 = vsel %vm760, %v860, %v859
    %v862 = vrot.slane %v843, 5
    %v863 = vsel %vm762, %v862, %v861
    %v864 = vrot.slane %v844, 4
    %v865 = vsel %vm764, %v864, %v863
    %v866 = vrot.slane %v845, 3
    %v867 = vsel %vm766, %v866, %v865
    %v868 = vrot.slane %v846, 2
    %v869 = vsel %vm768, %v868, %v867
    %v870 = vrot.slane %v847, 1
    %v871 = vsel %vm770, %v870, %v869
    %873 = vadd.xlane.f32.xlu0 %v871
    %v874 = vpop.xlane.xlu0 %873
    %v875 = vadd.f32 %v849, %v874
    %vm876 = vcmask 7168
    %877 = vst.msk [vmem:[%s12] sm:$0xff] %vm876, %v875
    %v878 = vld [vmem:[#allocation3] sm:$0xf]
    %v879 = vld [vmem:[#allocation3 + $0x4] sm:$0xf]
    %v880 = vld [vmem:[#allocation3 + $0x8] sm:$0xf]
    %v881 = vld [vmem:[#allocation3 + $0xc] sm:$0xf]
    %v882 = vld [vmem:[#allocation3 + $0x10] sm:$0xf]
    %v883 = vld [vmem:[#allocation3 + $0x14] sm:$0xf]
    %v884 = vld [vmem:[#allocation3 + $0x18] sm:$0xf]
    %v885 = vld [vmem:[#allocation3 + $0x1c] sm:$0xf]
    %v886 = vld [vmem:[#allocation3 + $0x20] sm:$0xf]
    %v887 = vld [vmem:[#allocation3 + $0x24] sm:$0xf]
    %v888 = vld [vmem:[#allocation3 + $0x28] sm:$0xf]
    %v889 = vld [vmem:[#allocation3 + $0x2c] sm:$0xf]
    %v890 = vld [vmem:[#allocation3 + $0x30] sm:$0xf]
    %v891 = vld [vmem:[#allocation3 + $0x34] sm:$0xf]
    %v892 = vld [vmem:[#allocation3 + $0x38] sm:$0xf]
    %v893 = vld [vmem:[#allocation3 + $0x3c] sm:$0xf]
    %v894 = vld [vmem:[#allocation3 + $0x40] sm:$0xf]
    %v895 = vld [vmem:[#allocation3 + $0x44] sm:$0xf]
    %v896 = vld [vmem:[#allocation3 + $0x48] sm:$0xf]
    %v897 = vld [vmem:[#allocation3 + $0x4c] sm:$0xf]
    %v898 = vld [vmem:[#allocation3 + $0x50] sm:$0xf]
    %v899 = vld [vmem:[#allocation3 + $0x54] sm:$0xf]
    %v900 = vld [vmem:[#allocation3 + $0x58] sm:$0xf]
    %v901 = vld [vmem:[#allocation3 + $0x5c] sm:$0xf]
    %v902 = vld [vmem:[#allocation3 + $0x60] sm:$0xf]
    %v903 = vld [vmem:[#allocation3 + $0x64] sm:$0xf]
    %v904 = vld [vmem:[#allocation3 + $0x68] sm:$0xf]
    %v905 = vld [vmem:[#allocation3 + $0x6c] sm:$0xf]
    %v906 = vld [vmem:[#allocation3 + $0x70] sm:$0xf]
    %v907 = vld [vmem:[#allocation3 + $0x74] sm:$0xf]
    %v908 = vld [vmem:[#allocation3 + $0x78] sm:$0xf]
    %v909 = vld [vmem:[#allocation3 + $0x7c] sm:$0xf]
    %v910 = vunpack.c.l.bf16 %v878
    %v911 = vunpack.c.l.bf16 %v879
    %v912 = vunpack.c.l.bf16 %v880
    %v913 = vunpack.c.l.bf16 %v881
    %v914 = vunpack.c.l.bf16 %v882
    %v915 = vunpack.c.l.bf16 %v883
    %v916 = vunpack.c.l.bf16 %v884
    %v917 = vunpack.c.l.bf16 %v885
    %v918 = vunpack.c.l.bf16 %v886
    %v919 = vunpack.c.l.bf16 %v887
    %v920 = vunpack.c.l.bf16 %v888
    %v921 = vunpack.c.l.bf16 %v889
    %v922 = vunpack.c.l.bf16 %v890
    %v923 = vunpack.c.l.bf16 %v891
    %v924 = vunpack.c.l.bf16 %v892
    %v925 = vunpack.c.l.bf16 %v893
    %v926 = vunpack.c.l.bf16 %v894
    %v927 = vunpack.c.l.bf16 %v895
    %v928 = vunpack.c.l.bf16 %v896
    %v929 = vunpack.c.l.bf16 %v897
    %v930 = vunpack.c.l.bf16 %v898
    %v931 = vunpack.c.l.bf16 %v899
    %v932 = vunpack.c.l.bf16 %v900
    %v933 = vunpack.c.l.bf16 %v901
    %v934 = vunpack.c.l.bf16 %v902
    %v935 = vunpack.c.l.bf16 %v903
    %v936 = vunpack.c.l.bf16 %v904
    %v937 = vunpack.c.l.bf16 %v905
    %v938 = vunpack.c.l.bf16 %v906
    %v939 = vunpack.c.l.bf16 %v907
    %v940 = vunpack.c.l.bf16 %v908
    %v941 = vunpack.c.l.bf16 %v909
    %v942 = vld [vmem:[#allocation9] sm:$0xff]
    %944 = vset.pattern.permute.xlu0 0
    %945 = vperm.xlu0 %944, %v780
    %v946 = vpop.permute.xlu0 %945
    %v948 = vmul.f32 %v946, %v942
    %v949 = vlaneseq
    %v950 = vshrl.u32 %v949, 7
    %v951 = vsub.s32 0, %v950
    %v952 = vrot.slane %v840, %v951
    %v953 = vlaneseq
    %v954 = vshrl.u32 %v953, 7
    %v955 = vsub.s32 0, %v954
    %v956 = vrot.slane %v841, %v955
    %v957 = vlaneseq
    %v958 = vshrl.u32 %v957, 7
    %v959 = vsub.s32 0, %v958
    %v960 = vrot.slane %v842, %v959
    %v961 = vlaneseq
    %v962 = vshrl.u32 %v961, 7
    %v963 = vsub.s32 0, %v962
    %v964 = vrot.slane %v843, %v963
    %v965 = vlaneseq
    %v966 = vshrl.u32 %v965, 7
    %v967 = vsub.s32 0, %v966
    %v968 = vrot.slane %v844, %v967
    %v969 = vlaneseq
    %v970 = vshrl.u32 %v969, 7
    %v971 = vsub.s32 0, %v970
    %v972 = vrot.slane %v845, %v971
    %v973 = vlaneseq
    %v974 = vshrl.u32 %v973, 7
    %v975 = vsub.s32 0, %v974
    %v976 = vrot.slane %v846, %v975
    %v977 = vlaneseq
    %v978 = vshrl.u32 %v977, 7
    %v979 = vsub.s32 0, %v978
    %v980 = vrot.slane %v847, %v979
    %v981 = vmul.f32 %v952, %v910
    %v982 = vmul.f32 %v952, %v911
    %v983 = vmul.f32 %v952, %v912
    %v984 = vmul.f32 %v952, %v913
    %v985 = vmul.f32 %v956, %v914
    %v986 = vmul.f32 %v956, %v915
    %v987 = vmul.f32 %v956, %v916
    %v988 = vmul.f32 %v956, %v917
    %v989 = vmul.f32 %v960, %v918
    %v990 = vmul.f32 %v960, %v919
    %v991 = vmul.f32 %v960, %v920
    %v992 = vmul.f32 %v960, %v921
    %v993 = vmul.f32 %v964, %v922
    %v994 = vmul.f32 %v964, %v923
    %v995 = vmul.f32 %v964, %v924
    %v996 = vmul.f32 %v964, %v925
    %v997 = vmul.f32 %v968, %v926
    %v998 = vmul.f32 %v968, %v927
    %v999 = vmul.f32 %v968, %v928
    %v1000 = vmul.f32 %v968, %v929
    %v1001 = vmul.f32 %v972, %v930
    %v1002 = vmul.f32 %v972, %v931
    %v1003 = vmul.f32 %v972, %v932
    %v1004 = vmul.f32 %v972, %v933
    %v1005 = vmul.f32 %v976, %v934
    %v1006 = vmul.f32 %v976, %v935
    %v1007 = vmul.f32 %v976, %v936
    %v1008 = vmul.f32 %v976, %v937
    %v1009 = vmul.f32 %v980, %v938
    %v1010 = vmul.f32 %v980, %v939
    %v1011 = vmul.f32 %v980, %v940
    %v1012 = vmul.f32 %v980, %v941
    %1013 = vadd.xlane.f32.xlu0 %v981
    %v1014 = vpop.xlane.xlu0 %1013
    %1015 = vadd.xlane.f32.xlu0 %v982
    %v1016 = vpop.xlane.xlu0 %1015
    %1017 = vadd.xlane.f32.xlu0 %v983
    %v1018 = vpop.xlane.xlu0 %1017
    %1019 = vadd.xlane.f32.xlu0 %v984
    %v1020 = vpop.xlane.xlu0 %1019
    %1021 = vadd.xlane.f32.xlu0 %v985
    %v1022 = vpop.xlane.xlu0 %1021
    %1023 = vadd.xlane.f32.xlu0 %v986
    %v1024 = vpop.xlane.xlu0 %1023
    %1025 = vadd.xlane.f32.xlu0 %v987
    %v1026 = vpop.xlane.xlu0 %1025
    %1027 = vadd.xlane.f32.xlu0 %v988
    %v1028 = vpop.xlane.xlu0 %1027
    %1029 = vadd.xlane.f32.xlu0 %v989
    %v1030 = vpop.xlane.xlu0 %1029
    %1031 = vadd.xlane.f32.xlu0 %v990
    %v1032 = vpop.xlane.xlu0 %1031
    %1033 = vadd.xlane.f32.xlu0 %v991
    %v1034 = vpop.xlane.xlu0 %1033
    %1035 = vadd.xlane.f32.xlu0 %v992
    %v1036 = vpop.xlane.xlu0 %1035
    %1037 = vadd.xlane.f32.xlu0 %v993
    %v1038 = vpop.xlane.xlu0 %1037
    %1039 = vadd.xlane.f32.xlu0 %v994
    %v1040 = vpop.xlane.xlu0 %1039
    %1041 = vadd.xlane.f32.xlu0 %v995
    %v1042 = vpop.xlane.xlu0 %1041
    %1043 = vadd.xlane.f32.xlu0 %v996
    %v1044 = vpop.xlane.xlu0 %1043
    %1045 = vadd.xlane.f32.xlu0 %v997
    %v1046 = vpop.xlane.xlu0 %1045
    %1047 = vadd.xlane.f32.xlu0 %v998
    %v1048 = vpop.xlane.xlu0 %1047
    %1049 = vadd.xlane.f32.xlu0 %v999
    %v1050 = vpop.xlane.xlu0 %1049
    %1051 = vadd.xlane.f32.xlu0 %v1000
    %v1052 = vpop.xlane.xlu0 %1051
    %1053 = vadd.xlane.f32.xlu0 %v1001
    %v1054 = vpop.xlane.xlu0 %1053
    %1055 = vadd.xlane.f32.xlu0 %v1002
    %v1056 = vpop.xlane.xlu0 %1055
    %1057 = vadd.xlane.f32.xlu0 %v1003
    %v1058 = vpop.xlane.xlu0 %1057
    %1059 = vadd.xlane.f32.xlu0 %v1004
    %v1060 = vpop.xlane.xlu0 %1059
    %1061 = vadd.xlane.f32.xlu0 %v1005
    %v1062 = vpop.xlane.xlu0 %1061
    %1063 = vadd.xlane.f32.xlu0 %v1006
    %v1064 = vpop.xlane.xlu0 %1063
    %1065 = vadd.xlane.f32.xlu0 %v1007
    %v1066 = vpop.xlane.xlu0 %1065
    %1067 = vadd.xlane.f32.xlu0 %v1008
    %v1068 = vpop.xlane.xlu0 %1067
    %1069 = vadd.xlane.f32.xlu0 %v1009
    %v1070 = vpop.xlane.xlu0 %1069
    %1071 = vadd.xlane.f32.xlu0 %v1010
    %v1072 = vpop.xlane.xlu0 %1071
    %1073 = vadd.xlane.f32.xlu0 %v1011
    %v1074 = vpop.xlane.xlu0 %1073
    %1075 = vadd.xlane.f32.xlu0 %v1012
    %v1076 = vpop.xlane.xlu0 %1075
    %v1109 = vlaneseq
    %v1110 = vand.u32 %v1109, 127
    %v1111 = vlaneseq
    %v1112 = vshrl.u32 %v1111, 7
    %v1113 = vsub.s32 %v1110, %v1112
    %v1114 = vrot.slane %v1014, %v1113
    %v1115 = vadd.s32 %v1110, 4294967288
    %v1116 = vlaneseq
    %v1117 = vshrl.u32 %v1116, 7
    %v1118 = vsub.s32 %v1115, %v1117
    %v1119 = vrot.slane %v1016, %v1118
    %vm1120 = vcmask 130112
    %v1121 = vsel %vm1120, %v1119, %v1114
    %v1122 = vadd.s32 %v1110, 4294967280
    %v1123 = vlaneseq
    %v1124 = vshrl.u32 %v1123, 7
    %v1125 = vsub.s32 %v1122, %v1124
    %v1126 = vrot.slane %v1018, %v1125
    %vm1127 = vcmask 195712
    %v1128 = vsel %vm1127, %v1126, %v1121
    %v1129 = vadd.s32 %v1110, 4294967272
    %v1130 = vlaneseq
    %v1131 = vshrl.u32 %v1130, 7
    %v1132 = vsub.s32 %v1129, %v1131
    %v1133 = vrot.slane %v1020, %v1132
    %vm1134 = vcmask 261312
    %v1135 = vsel %vm1134, %v1133, %v1128
    %v1136 = vlaneseq
    %v1137 = vshrl.u32 %v1136, 7
    %v1138 = vsub.s32 %v1110, %v1137
    %v1139 = vrot.slane %v1022, %v1138
    %v1140 = vlaneseq
    %v1141 = vshrl.u32 %v1140, 7
    %v1142 = vsub.s32 %v1115, %v1141
    %v1143 = vrot.slane %v1024, %v1142
    %v1144 = vsel %vm1120, %v1143, %v1139
    %v1145 = vlaneseq
    %v1146 = vshrl.u32 %v1145, 7
    %v1147 = vsub.s32 %v1122, %v1146
    %v1148 = vrot.slane %v1026, %v1147
    %v1149 = vsel %vm1127, %v1148, %v1144
    %v1150 = vlaneseq
    %v1151 = vshrl.u32 %v1150, 7
    %v1152 = vsub.s32 %v1129, %v1151
    %v1153 = vrot.slane %v1028, %v1152
    %v1154 = vsel %vm1134, %v1153, %v1149
    %v1155 = vlaneseq
    %v1156 = vshrl.u32 %v1155, 7
    %v1157 = vsub.s32 %v1110, %v1156
    %v1158 = vrot.slane %v1030, %v1157
    %v1159 = vlaneseq
    %v1160 = vshrl.u32 %v1159, 7
    %v1161 = vsub.s32 %v1115, %v1160
    %v1162 = vrot.slane %v1032, %v1161
    %v1163 = vsel %vm1120, %v1162, %v1158
    %v1164 = vlaneseq
    %v1165 = vshrl.u32 %v1164, 7
    %v1166 = vsub.s32 %v1122, %v1165
    %v1167 = vrot.slane %v1034, %v1166
    %v1168 = vsel %vm1127, %v1167, %v1163
    %v1169 = vlaneseq
    %v1170 = vshrl.u32 %v1169, 7
    %v1171 = vsub.s32 %v1129, %v1170
    %v1172 = vrot.slane %v1036, %v1171
    %v1173 = vsel %vm1134, %v1172, %v1168
    %v1174 = vlaneseq
    %v1175 = vshrl.u32 %v1174, 7
    %v1176 = vsub.s32 %v1110, %v1175
    %v1177 = vrot.slane %v1038, %v1176
    %v1178 = vlaneseq
    %v1179 = vshrl.u32 %v1178, 7
    %v1180 = vsub.s32 %v1115, %v1179
    %v1181 = vrot.slane %v1040, %v1180
    %v1182 = vsel %vm1120, %v1181, %v1177
    %v1183 = vlaneseq
    %v1184 = vshrl.u32 %v1183, 7
    %v1185 = vsub.s32 %v1122, %v1184
    %v1186 = vrot.slane %v1042, %v1185
    %v1187 = vsel %vm1127, %v1186, %v1182
    %v1188 = vlaneseq
    %v1189 = vshrl.u32 %v1188, 7
    %v1190 = vsub.s32 %v1129, %v1189
    %v1191 = vrot.slane %v1044, %v1190
    %v1192 = vsel %vm1134, %v1191, %v1187
    %v1193 = vlaneseq
    %v1194 = vshrl.u32 %v1193, 7
    %v1195 = vsub.s32 %v1110, %v1194
    %v1196 = vrot.slane %v1046, %v1195
    %v1197 = vlaneseq
    %v1198 = vshrl.u32 %v1197, 7
    %v1199 = vsub.s32 %v1115, %v1198
    %v1200 = vrot.slane %v1048, %v1199
    %v1201 = vsel %vm1120, %v1200, %v1196
    %v1202 = vlaneseq
    %v1203 = vshrl.u32 %v1202, 7
    %v1204 = vsub.s32 %v1122, %v1203
    %v1205 = vrot.slane %v1050, %v1204
    %v1206 = vsel %vm1127, %v1205, %v1201
    %v1207 = vlaneseq
    %v1208 = vshrl.u32 %v1207, 7
    %v1209 = vsub.s32 %v1129, %v1208
    %v1210 = vrot.slane %v1052, %v1209
    %v1211 = vsel %vm1134, %v1210, %v1206
    %v1212 = vlaneseq
    %v1213 = vshrl.u32 %v1212, 7
    %v1214 = vsub.s32 %v1110, %v1213
    %v1215 = vrot.slane %v1054, %v1214
    %v1216 = vlaneseq
    %v1217 = vshrl.u32 %v1216, 7
    %v1218 = vsub.s32 %v1115, %v1217
    %v1219 = vrot.slane %v1056, %v1218
    %v1220 = vsel %vm1120, %v1219, %v1215
    %v1221 = vlaneseq
    %v1222 = vshrl.u32 %v1221, 7
    %v1223 = vsub.s32 %v1122, %v1222
    %v1224 = vrot.slane %v1058, %v1223
    %v1225 = vsel %vm1127, %v1224, %v1220
    %v1226 = vlaneseq
    %v1227 = vshrl.u32 %v1226, 7
    %v1228 = vsub.s32 %v1129, %v1227
    %v1229 = vrot.slane %v1060, %v1228
    %v1230 = vsel %vm1134, %v1229, %v1225
    %v1231 = vlaneseq
    %v1232 = vshrl.u32 %v1231, 7
    %v1233 = vsub.s32 %v1110, %v1232
    %v1234 = vrot.slane %v1062, %v1233
    %v1235 = vlaneseq
    %v1236 = vshrl.u32 %v1235, 7
    %v1237 = vsub.s32 %v1115, %v1236
    %v1238 = vrot.slane %v1064, %v1237
    %v1239 = vsel %vm1120, %v1238, %v1234
    %v1240 = vlaneseq
    %v1241 = vshrl.u32 %v1240, 7
    %v1242 = vsub.s32 %v1122, %v1241
    %v1243 = vrot.slane %v1066, %v1242
    %v1244 = vsel %vm1127, %v1243, %v1239
    %v1245 = vlaneseq
    %v1246 = vshrl.u32 %v1245, 7
    %v1247 = vsub.s32 %v1129, %v1246
    %v1248 = vrot.slane %v1068, %v1247
    %v1249 = vsel %vm1134, %v1248, %v1244
    %v1250 = vlaneseq
    %v1251 = vshrl.u32 %v1250, 7
    %v1252 = vsub.s32 %v1110, %v1251
    %v1253 = vrot.slane %v1070, %v1252
    %v1254 = vlaneseq
    %v1255 = vshrl.u32 %v1254, 7
    %v1256 = vsub.s32 %v1115, %v1255
    %v1257 = vrot.slane %v1072, %v1256
    %v1258 = vsel %vm1120, %v1257, %v1253
    %v1259 = vlaneseq
    %v1260 = vshrl.u32 %v1259, 7
    %v1261 = vsub.s32 %v1122, %v1260
    %v1262 = vrot.slane %v1074, %v1261
    %v1263 = vsel %vm1127, %v1262, %v1258
    %v1264 = vlaneseq
    %v1265 = vshrl.u32 %v1264, 7
    %v1266 = vsub.s32 %v1129, %v1265
    %v1267 = vrot.slane %v1076, %v1266
    %v1268 = vsel %vm1134, %v1267, %v1263
    %v1269 = vsel %vm758, %v1154, %v1135
    %v1270 = vsel %vm760, %v1173, %v1269
    %v1271 = vsel %vm762, %v1192, %v1270
    %v1272 = vsel %vm764, %v1211, %v1271
    %v1273 = vsel %vm766, %v1230, %v1272
    %v1274 = vsel %vm768, %v1249, %v1273
    %v1275 = vsel %vm770, %v1268, %v1274
    %v1277 = vadd.f32 %v948, %v1275
    %vm1278 = vcmask 261120
    %1279 = vst.msk [vmem:[#allocation9] sm:$0xff] %vm1278, %v1277
    %1280 = vst.msk [vmem:[%s11] sm:$0xff] %vm876, %v777
    // Predicated region
    $region50: #{tpu_custom_call.1} parent=1 // pred_check
      _
    $region51: #{tpu_custom_call.1} parent=1 // pred_check_branch
      %1282 = sbr.rel (0) target = $region53
    $region52: #{tpu_custom_call.1} parent=1 // pred_region
      %s1284 = ssub.s32 128, 128
      %1285 = vsyncadd [#allocation5], %s1284
      %s1287 = sshll.u32 [#allocation8], 4
      %s1288 = int_to_ptr.vmem [resolvable:$true] %s1287
      %1290 = dma.vmem_to_hbm [thread:$0]  %s1288, 128, %s9, [#allocation5]
    $region53: #{tpu_custom_call.1} parent=1 // pred_fallthru
      _
    // Predicated region
    $region54: #{tpu_custom_call.1} parent=1 // pred_check
      _
    $region55: #{tpu_custom_call.1} parent=1 // pred_check_branch
      %1292 = sbr.rel (0) target = $region57
    $region56: #{tpu_custom_call.1} parent=1 // pred_region
      %s1294 = ssub.s32 128, 128
      %1295 = vsyncadd [#allocation10], %s1294
      %s1297 = sshll.u32 [#allocation9], 4
      %s1298 = int_to_ptr.vmem [resolvable:$true] %s1297
      %1300 = dma.vmem_to_hbm [thread:$0]  %s1298, 128, %s10, [#allocation10]
    $region57: #{tpu_custom_call.1} parent=1 // pred_fallthru
      _
    // Predicated region
    $region58: #{tpu_custom_call.1} parent=1 // pred_check
      _
    $region59: #{tpu_custom_call.1} parent=1 // pred_check_branch
      %1302 = sbr.rel (0) target = $region61
    $region60: #{tpu_custom_call.1} parent=1 // pred_region
      _
    $region61: #{tpu_custom_call.1} parent=1 // pred_fallthru
      _
    // Predicated region
    $region62: #{tpu_custom_call.1} parent=1 // pred_check
      _
    $region63: #{tpu_custom_call.1} parent=1 // pred_check_branch
      %1304 = sbr.rel (0) target = $region65
    $region64: #{tpu_custom_call.1} parent=1 // pred_region
      _
    $region65: #{tpu_custom_call.1} parent=1 // pred_fallthru
      _
    // Predicated region
    $region66: #{tpu_custom_call.1} parent=1 // pred_check
      _
    $region67: #{tpu_custom_call.1} parent=1 // pred_check_branch
      %1306 = sbr.rel (0) target = $region69
    $region68: #{tpu_custom_call.1} parent=1 // pred_region
      %1307 = dma.done [#allocation5], 128
    $region69: #{tpu_custom_call.1} parent=1 // pred_fallthru
      _
    // Predicated region
    $region70: #{tpu_custom_call.1} parent=1 // pred_check
      _
    $region71: #{tpu_custom_call.1} parent=1 // pred_check_branch
      %1309 = sbr.rel (0) target = $region73
    $region72: #{tpu_custom_call.1} parent=1 // pred_region
      %1310 = dma.done [#allocation10], 128
    $region73: #{tpu_custom_call.1} parent=1 // pred_fallthru
      _
    // Predicated region
    $region74: #{tpu_custom_call.1} parent=1 // pred_check
      _
    $region75: #{tpu_custom_call.1} parent=1 // pred_check_branch
      %1312 = sbr.rel (0) target = $region77
    $region76: #{tpu_custom_call.1} parent=1 // pred_region
      _
    $region77: #{tpu_custom_call.1} parent=1 // pred_fallthru
      _
    // Predicated region
    $region78: #{tpu_custom_call.1} parent=1 // pred_check
      _
    $region79: #{tpu_custom_call.1} parent=1 // pred_check_branch
      %1314 = sbr.rel (0) target = $region81
    $region80: #{tpu_custom_call.1} parent=1 // pred_region
      _
    $region81: #{tpu_custom_call.1} parent=1 // pred_fallthru
      _
    %1315 = vsyncpa [#allocation4], 1
    %1316 = vsyncpa [#allocation7], 1
    %1317 = vsyncpa [#allocation5], 1
    %1318 = vsyncpa [#allocation10], 1

</llo_original>
